<compile_context>
chip_gen: v5e
topology: v5e:2x2
jax: 0.10.0
libtpu: 0.0.40
codegen_flags: <defaults>
</compile_context>

<pallas_src>
import jax
import jax.numpy as jnp
from jax.experimental import pallas as pl
from jax.experimental.pallas import tpu as pltpu


_LANE = 128                              # vreg lane width
_MAX_SLAB_COLS = 1024                    # cap on slab column width
_TILE_BYTES = 4 * 1024 * 1024            # ~4 MiB block -> 16 MiB double-buffered in+out
_VMEM_LIMIT_BYTES = 40 * 1024 * 1024     # explicit scoped-VMEM budget (safe on v5e/v6e/v7x)
_PALLAS_MIN_ELEMENTS = 1 << 20           # below ~4 MiB f32, XLA's fused add wins


def _double_kernel(x_ref, o_ref):
    # Load the tile once (one vld per vreg), double on the VPU, unmasked store.
    v = x_ref[...]
    o_ref[...] = v + v


def _pick_slab_cols(n):
    """Largest multiple of 128 (<= _MAX_SLAB_COLS) that exactly divides n."""
    for c in range(_MAX_SLAB_COLS, 0, -_LANE):
        if n % c == 0:
            return c
    return None


def _double_pallas(x, tile_bytes=_TILE_BYTES):
    """x + x through a tiled, lane-dense Pallas kernel — with zero extra copies."""
    n = x.size
    c = _pick_slab_cols(n) if n else None
    if c is None:
        # Ragged size: building a lane-dense slab would need a pad copy (a full
        # extra HBM pass), which costs more than the kernel itself.  Let XLA
        # fuse the add instead.
        return x + x

    itemsize = x.dtype.itemsize
    sublane = max(8, 32 // itemsize)     # f32: 8, bf16/f16: 16, int8/fp8: 32
    r = n // c
    slab = x.reshape(r, c)               # metadata only — no copy

    target_rows = max(sublane, tile_bytes // (c * itemsize))
    if r <= target_rows:
        tile_r = r                       # single block == full array extent (always legal)
    else:
        tile_r = (target_rows // sublane) * sublane

    grid = (pl.cdiv(r, tile_r),)         # partial last block OK: writes masked,
                                         # pad-region reads harmless for elementwise x+x

    out = pl.pallas_call(
        _double_kernel,
        out_shape=jax.ShapeDtypeStruct((r, c), x.dtype),
        grid=grid,
        in_specs=[pl.BlockSpec((tile_r, c), lambda i: (i, 0))],
        out_specs=pl.BlockSpec((tile_r, c), lambda i: (i, 0)),
        compiler_params=pltpu.CompilerParams(
            dimension_semantics=("parallel",),
            vmem_limit_bytes=_VMEM_LIMIT_BYTES),
        cost_estimate=pl.CostEstimate(
            flops=n, transcendentals=0, bytes_accessed=2 * n * itemsize),
    )(slab)

    return out.reshape(x.shape)          # metadata only — no copy


def simple_squeeze_model(x, dimension=None, inplace=False, force_pallas=False):
    """Pallas implementation of SimpleSqueezeModel.forward.

    `inplace` only changes aliasing in torch; the returned value is identical,
    so it is ignored here.
    """
    # TODO(synk): torch's squeeze_ in-place aliasing has no JAX equivalent;
    # only value semantics are reproduced.
    if force_pallas or x.size >= _PALLAS_MIN_ELEMENTS:
        doubled = _double_pallas(x)
    else:
        # Tiny input: launch + per-grid-step overhead dominates; let XLA fuse it.
        doubled = x + x

    # Mirror the module's truthiness check (`elif self.dimension:`):
    # dimension in (None, 0) falls through to the squeeze-all branch.
    if dimension:
        if doubled.shape[dimension] == 1:
            return jnp.squeeze(doubled, axis=dimension)
        return doubled                   # torch.squeeze(t, d) no-op when dim != 1
    return jnp.squeeze(doubled)


if __name__ == "__main__":
    key = jax.random.PRNGKey(0)
    # Small shape with a squeezable dim, consistent with the squeeze test.
    x = jax.random.normal(key, (2, 1, 16, 16), dtype=jnp.float32)

    # dimension=None case (squeeze all size-1 dims) -- force the Pallas path so
    # the kernel itself is exercised even at this tiny size.
    out_all = jax.block_until_ready(
        simple_squeeze_model(x, dimension=None, force_pallas=True))
    ref_all = jnp.squeeze(x + x)
    assert out_all.shape == ref_all.shape == (2, 16, 16), out_all.shape
    assert jnp.allclose(out_all, ref_all)

    # dimension=1 case.
    out_dim = jax.block_until_ready(
        simple_squeeze_model(x, dimension=1, force_pallas=True))
    ref_dim = jnp.squeeze(x + x, axis=1)
    assert out_dim.shape == ref_dim.shape == (2, 16, 16), out_dim.shape
    assert jnp.allclose(out_dim, ref_dim)

    # dimension given but not size-1 -> no-op squeeze (matches torch.squeeze).
    out_noop = jax.block_until_ready(
        simple_squeeze_model(x, dimension=3, force_pallas=True))
    assert out_noop.shape == (2, 1, 16, 16), out_noop.shape
    assert jnp.allclose(out_noop, x + x)

    # Multi-block grid with a PARTIAL (masked) last block: force a tiny tile.
    # n=25600 -> slab (25, 1024), tile_r=8 -> grid=4, last block has 1 valid row.
    x_med = jax.random.normal(key, (2, 1, 100, 128), dtype=jnp.float32)
    out_med = jax.block_until_ready(_double_pallas(x_med, tile_bytes=32 * 1024))
    assert out_med.shape == x_med.shape
    assert jnp.allclose(out_med, x_med + x_med)

    # Larger input: single contiguous lane-dense (128, 1024) block.
    x_big = jax.random.normal(key, (4, 1, 128, 256), dtype=jnp.float32)
    out_big = jax.block_until_ready(
        simple_squeeze_model(x_big, dimension=None, force_pallas=True))
    ref_big = jnp.squeeze(x_big + x_big)
    assert out_big.shape == ref_big.shape == (4, 128, 256), out_big.shape
    assert jnp.allclose(out_big, ref_big)

    # bf16 path exercises dtype-aware sublane rounding (tile_r multiple of 16).
    x_bf16 = jax.random.normal(key, (2, 1, 256, 128),
                               dtype=jnp.float32).astype(jnp.bfloat16)
    out_bf16 = jax.block_until_ready(_double_pallas(x_bf16, tile_bytes=32 * 1024))
    assert out_bf16.dtype == jnp.bfloat16
    assert jnp.allclose(out_bf16.astype(jnp.float32),
                        (x_bf16 + x_bf16).astype(jnp.float32))

    # Ragged size (not a multiple of 128): pad-free fallback to the fused XLA add.
    x_odd = jax.random.normal(key, (3, 1, 5, 7), dtype=jnp.float32)
    out_odd = jax.block_until_ready(
        simple_squeeze_model(x_odd, dimension=None, force_pallas=True))
    assert out_odd.shape == (3, 5, 7), out_odd.shape
    assert jnp.allclose(out_odd, jnp.squeeze(x_odd + x_odd))

    # Tiny-input fallback path (no Pallas) still matches.
    out_small = jax.block_until_ready(simple_squeeze_model(x, dimension=None))
    assert jnp.allclose(out_small, ref_all)

    print("KERNEL_OK")
</pallas_src>

<mosaic_0001>
module attributes {stable_mosaic.version = 11 : i64} {
  func.func @_double_kernel(%arg0: i32, %arg1: memref<1x512xf32, #tpu.memory_space<vmem>>, %arg2: memref<1x512xf32, #tpu.memory_space<vmem>>) attributes {dimension_semantics = [#tpu.dimension_semantics<parallel>], iteration_bounds = array<i64: 1>, scalar_prefetch = 0 : i64, scratch_operands = 0 : i64, tpu.core_type = #tpu.core_type<tc>, window_params = [{transform_indices = @transform_0, window_bounds = array<i64: 1, 512>}, {transform_indices = @transform_1, window_bounds = array<i64: 1, 512>}]} {
    %c0 = arith.constant 0 : index
    %c0_0 = arith.constant 0 : index
    %0 = vector.load %arg1[%c0, %c0_0] : memref<1x512xf32, #tpu.memory_space<vmem>>, vector<1x512xf32>
    %1 = arith.addf %0, %0 : vector<1x512xf32>
    %c0_1 = arith.constant 0 : index
    %c0_2 = arith.constant 0 : index
    %2 = vector.load %arg2[%c0_1, %c0_2] : memref<1x512xf32, #tpu.memory_space<vmem>>, vector<1x512xf32>
    tpu.vector_store %arg2[%c0_1, %c0_2], %1 {strides = array<i32>} : memref<1x512xf32, #tpu.memory_space<vmem>>, vector<1x512xf32>,
    return
  }
  func.func @transform_0(%arg0: i32) -> (i32, i32) {
    %c0_i32 = arith.constant 0 : i32
    %c0_i32_0 = arith.constant 0 : i32
    return %arg0, %c0_i32 : i32, i32
  }
  func.func @transform_1(%arg0: i32) -> (i32, i32) {
    %c0_i32 = arith.constant 0 : i32
    %c0_i32_0 = arith.constant 0 : i32
    return %arg0, %c0_i32 : i32, i32
  }
}

</mosaic_0001>

<llo_original>
// kernel: tpu_custom_call.1
$region0: #{tpu_custom_call.1}
  #allocation0 [shape = 'u32[]', space=smem, size = 0x4, offset = 0x4, fixed_abs, tag = 'smem constant byte address 0x4 - core index']
  #allocation1 [shape = 'u32[72,128]{1,0:T(1,128)}', space=vmem, size = 0x9000, scoped, tag = 'internal scratch']
  %s0 = inlined_call_operand.hbm [shape: f32[1,512], index: 0, kind: input, shape index: {}]
  %s1 = inlined_call_operand.hbm [shape: f32[1,512], index: 1, kind: output, shape index: {}]
  %s2 = sld [smem:[#allocation0]]
  $region18: #{tpu_custom_call.1} parent=0
    _
  %s4 = ssub.s32 1, %s2
  %s5 = scalar_select 0, %s4, %s2
  $region1: #{tpu_custom_call.1} parent=0
    #allocation2 [shape = 'u8[2048]{0}', space=vmem, size = 0x800, scoped, tag = 'input window, operand 0, single buffered']
    #allocation3 [shape = 's32[1]{0}', space=sflag, size = 0x4, scoped, tag = 'scoped memory for tpu_custom_call.1']
    #allocation4 [shape = 's32[1]{0}', space=sflag, size = 0x4, scoped, tag = 'scoped memory for tpu_custom_call.1']
    #allocation5 [shape = 'u8[2048]{0}', space=vmem, size = 0x800, scoped, tag = 'output window, operand 0, single buffered']
    %6 = vsyncpa [#allocation3], 0
    %7 = vsyncpa [#allocation4], 0
    // Predicated region
    $region2: #{tpu_custom_call.1} parent=1 // pred_check
      _
    $region3: #{tpu_custom_call.1} parent=1 // pred_check_branch
      %9 = sbr.rel (0) target = $region5
    $region4: #{tpu_custom_call.1} parent=1 // pred_region
      %11 = vsyncadd [#allocation3], 0
      %s13 = sshll.u32 %s0, 4
      %s14 = int_to_ptr.hbm [resolvable:$true] %s13
      %s15 = sshll.u32 [#allocation2], 4
      %s16 = int_to_ptr.vmem [resolvable:$true] %s15
      %18 = dma.hbm_to_vmem [thread:$0]  %s14, 64, %s16, [#allocation3]
    $region5: #{tpu_custom_call.1} parent=1 // pred_fallthru
      _
    // Predicated region
    $region6: #{tpu_custom_call.1} parent=1 // pred_check
      _
    $region7: #{tpu_custom_call.1} parent=1 // pred_check_branch
      %20 = sbr.rel (0) target = $region9
    $region8: #{tpu_custom_call.1} parent=1 // pred_region
      %22 = dma.done [#allocation3], 64
    $region9: #{tpu_custom_call.1} parent=1 // pred_fallthru
      _
    %v23 = vld [vmem:[#allocation2] sm:$0xf]
    %v24 = vadd.f32 %v23, %v23
    %v25 = vlaneseq
    %vm26 = vcmp.ge.s32.totalorder %v25, 0
    %vm27 = vcmp.lt.s32.totalorder %v25, 512
    %vm28 = vmand %vm26, %vm27
    %29 = vst.msk [vmem:[#allocation5] sm:$0xf] %vm28, %v24
    // Predicated region
    $region10: #{tpu_custom_call.1} parent=1 // pred_check
      _
    $region11: #{tpu_custom_call.1} parent=1 // pred_check_branch
      %31 = sbr.rel (0) target = $region13
    $region12: #{tpu_custom_call.1} parent=1 // pred_region
      %33 = vsyncadd [#allocation4], 0
      %s35 = sshll.u32 [#allocation5], 4
      %s36 = int_to_ptr.vmem [resolvable:$true] %s35
      %s37 = sshll.u32 %s1, 4
      %s38 = int_to_ptr.hbm [resolvable:$true] %s37
      %40 = dma.vmem_to_hbm [thread:$0]  %s36, 64, %s38, [#allocation4]
    $region13: #{tpu_custom_call.1} parent=1 // pred_fallthru
      _
    // Predicated region
    $region14: #{tpu_custom_call.1} parent=1 // pred_check
      _
    $region15: #{tpu_custom_call.1} parent=1 // pred_check_branch
      %42 = sbr.rel (0) target = $region17
    $region16: #{tpu_custom_call.1} parent=1 // pred_region
      %44 = dma.done [#allocation4], 64
    $region17: #{tpu_custom_call.1} parent=1 // pred_fallthru
      _
    %45 = vsyncpa [#allocation3], 1
    %46 = vsyncpa [#allocation4], 1

</llo_original>
